<compile_context>
chip_gen: v5e
topology: v5e:2x2
jax: 0.10.0
libtpu: 0.0.40
codegen_flags: <defaults>
</compile_context>

<pallas_src>
import functools

import jax
import jax.numpy as jnp
from jax import lax
from jax.experimental import pallas as pl
from jax.experimental.pallas import tpu as pltpu


def _round_up(x, m):
    return ((x + m - 1) // m) * m


def _pick_t_chunk(seq_len, max_chunk):
    """Largest chunk <= max_chunk, preferring an exact divisor of seq_len."""
    max_chunk = max(1, min(max_chunk, seq_len))
    if seq_len <= max_chunk:
        return seq_len
    for c in range(max_chunk, 0, -1):
        if seq_len % c == 0 and c >= max(1, max_chunk // 4):
            return c
    return max_chunk  # no good divisor: pad the tail chunk


# ---------------------------------------------------------------------------
# Fused kernel: per grid step (batch_block b, time_chunk c)
#   1) chunk input projection  x @ W_ih^T + (b_ih + b_hh)   (one MXU matmul)
#   2) t_chunk-step recurrence h = act(proj[t] + h @ W_hh^T) with h resident
#      in VMEM scratch across time chunks.
# ---------------------------------------------------------------------------
def _rnn_fused_kernel(x_ref, h0_ref, w_ih_t_ref, w_hh_t_ref, bias_ref,
                      hseq_ref, h_scratch, *,
                      activation, t_chunk, batch_blk, input_size, hidden_p,
                      hoist_whh, unroll):
    # First time chunk of this batch block: (re)load the initial hidden state.
    @pl.when(pl.program_id(1) == 0)
    def _():
        h_scratch[...] = h0_ref[...]

    # ---- fused input projection for the whole chunk ----
    # Written straight into the output block (doubles as the proj buffer):
    # no extra VMEM scratch, no HBM round trip between stages.
    x2 = x_ref[...].reshape(t_chunk * batch_blk, input_size)
    proj = (jnp.dot(x2, w_ih_t_ref[...], preferred_element_type=jnp.float32)
            + bias_ref[...])
    hseq_ref[...] = proj.reshape(t_chunk, batch_blk, hidden_p)

    # Hoist the recurrent weight into vregs only when small (128x128 f32 = 16
    # vregs); larger weights are streamed from VMEM inside the dot so the
    # partially-unrolled loop does not spill on the serial critical path.
    if hoist_whh:
        w_hh_t = w_hh_t_ref[...]

    def act(v):
        return jnp.tanh(v) if activation == "tanh" else jnp.maximum(v, 0.0)

    def step(i, h):
        rhs = w_hh_t if hoist_whh else w_hh_t_ref[...]
        h_new = act(hseq_ref[i]
                    + jnp.dot(h, rhs, preferred_element_type=jnp.float32))
        hseq_ref[i] = h_new
        return h_new

    h_scratch[...] = lax.fori_loop(0, t_chunk, step, h_scratch[...],
                                   unroll=unroll)


def rnn_forward(x, h0, w_ih, w_hh, b_ih, b_hh, activation="tanh",
                max_t_chunk=128):
    """Full-sequence vanilla RNN forward pass via a single Pallas kernel.

    x:  (seq_len, batch, input_size)  float32
    h0: (1, batch, hidden_size) or None (zeros)
    Returns (h_seq, h_last):
        h_seq:  (seq_len, batch, hidden_size)
        h_last: (1, batch, hidden_size)
    """
    if activation not in ("tanh", "relu"):
        raise ValueError(f"unsupported activation: {activation}")

    seq_len, batch, input_size = x.shape
    hidden = w_ih.shape[0]
    f32 = jnp.float32

    if h0 is None:
        h0 = jnp.zeros((1, batch, hidden), f32)

    try:
        kind = jax.devices()[0].device_kind.lower()
    except Exception:  # pragma: no cover
        kind = ""

    # Hardware-friendly padding: f32 sublane=8, lane=128.  On >=v6e the MXU is
    # 256-wide, so round large hidden sizes to 256 (K/N of the recurrent dot).
    batch_p = _round_up(batch, 8)
    if hidden > 256 and "v5" not in kind:
        hidden_p = _round_up(hidden, 256)
    else:
        hidden_p = _round_up(hidden, 128)

    t_chunk = _pick_t_chunk(seq_len, max_t_chunk)
    seq_p = _round_up(seq_len, t_chunk)

    # v7x has 2 TensorCores per chip: shard independent batch rows across them.
    n_batch_blocks = 2 if ("v7" in kind and batch_p % 16 == 0) else 1
    batch_blk = batch_p // n_batch_blocks  # multiple of 8 by construction

    # Padded / pre-transposed operands (transposes stay outside the kernel).
    x_p = jnp.zeros((seq_p, batch_p, input_size), f32)
    x_p = x_p.at[:seq_len, :batch, :].set(x.astype(f32))
    h0_p = jnp.zeros((batch_p, hidden_p), f32).at[:batch, :hidden].set(
        h0[0].astype(f32))
    w_ih_t_p = jnp.zeros((input_size, hidden_p), f32).at[:, :hidden].set(
        w_ih.astype(f32).T)
    w_hh_t_p = jnp.zeros((hidden_p, hidden_p), f32).at[:hidden, :hidden].set(
        w_hh.astype(f32).T)
    # Fold both biases into the projection; padded hidden lanes stay exactly 0
    # through the recurrence (act(0) == 0 for tanh and relu).
    bias_p = jnp.zeros((1, hidden_p), f32).at[0, :hidden].set(
        b_ih.astype(f32) + b_hh.astype(f32))

    unroll = t_chunk if t_chunk <= 16 else 8
    hoist_whh = hidden_p <= 128

    kernel = functools.partial(
        _rnn_fused_kernel, activation=activation, t_chunk=t_chunk,
        batch_blk=batch_blk, input_size=input_size, hidden_p=hidden_p,
        hoist_whh=hoist_whh, unroll=unroll)

    # VMEM budget: double-buffered x/h0/out blocks + resident weights + scratch.
    est = 4 * (2 * t_chunk * batch_blk * input_size
               + 2 * batch_blk * hidden_p
               + input_size * hidden_p + hidden_p * hidden_p + hidden_p
               + 2 * t_chunk * batch_blk * hidden_p
               + batch_blk * hidden_p)
    vmem_limit = int(min(64 * 2**20, max(16 * 2**20, 2 * est)))

    # Loop-invariant operands: a single resident VMEM copy (no double buffer).
    resident = pl.BlockSpec(memory_space=pltpu.MemorySpace.VMEM)

    h_seq_p = pl.pallas_call(
        kernel,
        grid_spec=pltpu.PrefetchScalarGridSpec(
            num_scalar_prefetch=0,
            grid=(n_batch_blocks, seq_p // t_chunk),
            in_specs=[
                pl.BlockSpec((t_chunk, batch_blk, input_size),
                             lambda b, c: (c, b, 0)),            # x chunk
                pl.BlockSpec((batch_blk, hidden_p),
                             lambda b, c: (b, 0)),               # h0
                resident,                                        # W_ih^T
                resident,                                        # W_hh^T
                resident,                                        # b_ih + b_hh
            ],
            out_specs=pl.BlockSpec((t_chunk, batch_blk, hidden_p),
                                   lambda b, c: (c, b, 0)),
            scratch_shapes=[pltpu.VMEM((batch_blk, hidden_p), jnp.float32)],
        ),
        out_shape=jax.ShapeDtypeStruct((seq_p, batch_p, hidden_p), f32),
        compiler_params=pltpu.CompilerParams(
            # batch blocks are independent; time recurrence is sequential
            dimension_semantics=("parallel", "arbitrary"),
            vmem_limit_bytes=vmem_limit,
        ),
    )(x_p, h0_p, w_ih_t_p, w_hh_t_p, bias_p)

    # Unpad and slice h_last from h_seq (no separate kernel output needed).
    h_seq = h_seq_p[:seq_len, :batch, :hidden]
    h_last = h_seq[seq_len - 1:, :, :]
    return h_seq, h_last


def rnn_reference(x, h0, w_ih, w_hh, b_ih, b_hh, activation="tanh"):
    """Pure-JAX reference (same semantics as torch.nn.RNN)."""
    act = jnp.tanh if activation == "tanh" else (lambda v: jnp.maximum(v, 0.0))

    def step(h, x_t):
        h_new = act(x_t @ w_ih.T + b_ih + h @ w_hh.T + b_hh)
        return h_new, h_new

    h_last, h_seq = jax.lax.scan(step, h0[0], x)
    return h_seq, h_last[None]


def _make_inputs(key, seq_len, batch, input_size, hidden_size):
    k_x, k_h, k_wi, k_wh, k_bi, k_bh = jax.random.split(key, 6)
    bound = 1.0 / (hidden_size ** 0.5)  # PyTorch-style U(-1/sqrt(H), 1/sqrt(H))
    w_ih = jax.random.uniform(k_wi, (hidden_size, input_size), jnp.float32,
                              -bound, bound)
    w_hh = jax.random.uniform(k_wh, (hidden_size, hidden_size), jnp.float32,
                              -bound, bound)
    b_ih = jax.random.uniform(k_bi, (hidden_size,), jnp.float32, -bound, bound)
    b_hh = jax.random.uniform(k_bh, (hidden_size,), jnp.float32, -bound, bound)
    x = jax.random.normal(k_x, (seq_len, batch, input_size), jnp.float32)
    h0 = jax.random.normal(k_h, (1, batch, hidden_size), jnp.float32)
    return x, h0, w_ih, w_hh, b_ih, b_hh


if __name__ == "__main__":
    key = jax.random.PRNGKey(0)
    k1, k2 = jax.random.split(key)

    # ---- Test 1: module defaults (input_size=1, hidden_size=20, tanh) ----
    seq_len, batch, input_size, hidden_size = 8, 2, 1, 20
    x, h0, w_ih, w_hh, b_ih, b_hh = _make_inputs(k1, seq_len, batch,
                                                 input_size, hidden_size)
    fwd = jax.jit(functools.partial(rnn_forward, activation="tanh"))
    h_seq, h_last = fwd(x, h0, w_ih, w_hh, b_ih, b_hh)
    jax.block_until_ready((h_seq, h_last))

    h_seq_ref, h_last_ref = rnn_reference(x, h0, w_ih, w_hh, b_ih, b_hh, "tanh")
    assert h_seq.shape == (seq_len, batch, hidden_size)
    assert h_last.shape == (1, batch, hidden_size)
    assert jnp.allclose(h_seq, h_seq_ref, atol=1e-5, rtol=1e-5)
    assert jnp.allclose(h_last, h_last_ref, atol=1e-5, rtol=1e-5)

    # ---- Test 2: multi-chunk recurrence path (relu, padded batch/hidden) ----
    seq_len2, batch2, input_size2, hidden_size2 = 40, 3, 5, 20
    x2, h02, w_ih2, w_hh2, b_ih2, b_hh2 = _make_inputs(
        k2, seq_len2, batch2, input_size2, hidden_size2)
    fwd2 = jax.jit(functools.partial(rnn_forward, activation="relu",
                                     max_t_chunk=16))  # forces 4 time chunks
    h_seq2, h_last2 = fwd2(x2, h02, w_ih2, w_hh2, b_ih2, b_hh2)
    jax.block_until_ready((h_seq2, h_last2))

    h_seq2_ref, h_last2_ref = rnn_reference(x2, h02, w_ih2, w_hh2, b_ih2,
                                            b_hh2, "relu")
    assert h_seq2.shape == (seq_len2, batch2, hidden_size2)
    assert h_last2.shape == (1, batch2, hidden_size2)
    assert jnp.allclose(h_seq2, h_seq2_ref, atol=1e-4, rtol=1e-4)
    assert jnp.allclose(h_last2, h_last2_ref, atol=1e-4, rtol=1e-4)

    print("KERNEL_OK")
</pallas_src>

<mosaic_0001>
module attributes {stable_mosaic.version = 11 : i64} {
  func.func @_rnn_fused_kernel(%arg0: i32, %arg1: i32, %arg2: memref<8x8x1xf32, #tpu.memory_space<vmem>>, %arg3: memref<8x128xf32, #tpu.memory_space<vmem>>, %arg4: memref<1x128xf32, #tpu.memory_space<vmem>>, %arg5: memref<128x128xf32, #tpu.memory_space<vmem>>, %arg6: memref<1x128xf32, #tpu.memory_space<vmem>>, %arg7: memref<8x8x128xf32, #tpu.memory_space<vmem>>, %arg8: memref<8x128xf32, #tpu.memory_space<vmem>>) attributes {dimension_semantics = [#tpu.dimension_semantics<parallel>, #tpu.dimension_semantics<arbitrary>], iteration_bounds = array<i64: 1, 1>, scalar_prefetch = 0 : i64, scratch_operands = 1 : i64, tpu.core_type = #tpu.core_type<tc>, window_params = [{transform_indices = @transform_0, window_bounds = array<i64: 8, 8, 1>}, {transform_indices = @transform_1, window_bounds = array<i64: 8, 128>}, {pipeline_mode = #tpu.pipeline_mode<synchronous>, transform_indices = @transform_2, window_bounds = array<i64: 1, 128>}, {pipeline_mode = #tpu.pipeline_mode<synchronous>, transform_indices = @transform_3, window_bounds = array<i64: 128, 128>}, {pipeline_mode = #tpu.pipeline_mode<synchronous>, transform_indices = @transform_4, window_bounds = array<i64: 1, 128>}, {transform_indices = @transform_5, window_bounds = array<i64: 8, 8, 128>}]} {
    %c0_i32 = arith.constant 0 : i32
    %0 = arith.cmpi eq, %arg1, %c0_i32 : i32
    %1 = arith.extui %0 : i1 to i32
    %c0_i32_0 = arith.constant 0 : i32
    %2 = arith.cmpi ne, %1, %c0_i32_0 : i32
    scf.if %2 {
      %c0_57 = arith.constant 0 : index
      %c0_58 = arith.constant 0 : index
      %95 = vector.load %arg3[%c0_57, %c0_58] : memref<8x128xf32, #tpu.memory_space<vmem>>, vector<8x128xf32>
      %c0_59 = arith.constant 0 : index
      %c0_60 = arith.constant 0 : index
      %96 = vector.load %arg8[%c0_59, %c0_60] : memref<8x128xf32, #tpu.memory_space<vmem>>, vector<8x128xf32>
      tpu.vector_store %arg8[%c0_59, %c0_60], %95 {strides = array<i32>} : memref<8x128xf32, #tpu.memory_space<vmem>>, vector<8x128xf32>,
    } else {
    }
    %c0 = arith.constant 0 : index
    %c0_1 = arith.constant 0 : index
    %c0_2 = arith.constant 0 : index
    %3 = vector.load %arg2[%c0, %c0_1, %c0_2] : memref<8x8x1xf32, #tpu.memory_space<vmem>>, vector<8x8x1xf32>
    %4 = vector.shape_cast %3 : vector<8x8x1xf32> to vector<64x1xf32>
    %c0_3 = arith.constant 0 : index
    %c0_4 = arith.constant 0 : index
    %5 = vector.load %arg4[%c0_3, %c0_4] : memref<1x128xf32, #tpu.memory_space<vmem>>, vector<1x128xf32>
    %cst = arith.constant dense<0.000000e+00> : vector<64x128xf32>
    %6 = tpu.matmul %4, %5, %cst {dimension_numbers = #tpu.dot_dimension_numbers<[1], [0], [0], [1], [0, 0, 1, 1], [], []>} : vector<64x1xf32>, vector<1x128xf32>, vector<64x128xf32> -> vector<64x128xf32>
    %c0_5 = arith.constant 0 : index
    %c0_6 = arith.constant 0 : index
    %7 = vector.load %arg6[%c0_5, %c0_6] : memref<1x128xf32, #tpu.memory_space<vmem>>, vector<1x128xf32>
    %8 = vector.broadcast %7 : vector<1x128xf32> to vector<64x128xf32>
    %9 = arith.addf %6, %8 : vector<64x128xf32>
    %10 = vector.shape_cast %9 : vector<64x128xf32> to vector<8x8x128xf32>
    %c0_7 = arith.constant 0 : index
    %c0_8 = arith.constant 0 : index
    %c0_9 = arith.constant 0 : index
    %11 = vector.load %arg7[%c0_7, %c0_8, %c0_9] : memref<8x8x128xf32, #tpu.memory_space<vmem>>, vector<8x8x128xf32>
    tpu.vector_store %arg7[%c0_7, %c0_8, %c0_9], %10 {strides = array<i32>} : memref<8x8x128xf32, #tpu.memory_space<vmem>>, vector<8x8x128xf32>,
    %c0_10 = arith.constant 0 : index
    %c0_11 = arith.constant 0 : index
    %12 = vector.load %arg5[%c0_10, %c0_11] : memref<128x128xf32, #tpu.memory_space<vmem>>, vector<128x128xf32>
    %c0_12 = arith.constant 0 : index
    %c0_13 = arith.constant 0 : index
    %13 = vector.load %arg8[%c0_12, %c0_13] : memref<8x128xf32, #tpu.memory_space<vmem>>, vector<8x128xf32>
    %c0_i32_14 = arith.constant 0 : i32
    %14 = arith.index_cast %c0_i32_14 : i32 to index
    %c0_15 = arith.constant 0 : index
    %c0_16 = arith.constant 0 : index
    %15 = vector.load %arg7[%14, %c0_15, %c0_16] : memref<8x8x128xf32, #tpu.memory_space<vmem>>, vector<1x8x128xf32>
    %16 = vector.shape_cast %15 : vector<1x8x128xf32> to vector<8x128xf32>
    %cst_17 = arith.constant dense<0.000000e+00> : vector<8x128xf32>
    %17 = tpu.matmul %13, %12, %cst_17 {dimension_numbers = #tpu.dot_dimension_numbers<[1], [0], [0], [1], [0, 0, 1, 1], [], []>} : vector<8x128xf32>, vector<128x128xf32>, vector<8x128xf32> -> vector<8x128xf32>
    %18 = arith.addf %16, %17 : vector<8x128xf32>
    %19 = math.tanh %18 : vector<8x128xf32>
    %20 = arith.index_cast %c0_i32_14 : i32 to index
    %c0_18 = arith.constant 0 : index
    %c0_19 = arith.constant 0 : index
    %21 = vector.load %arg7[%20, %c0_18, %c0_19] : memref<8x8x128xf32, #tpu.memory_space<vmem>>, vector<1x8x128xf32>
    %22 = vector.shape_cast %21 : vector<1x8x128xf32> to vector<8x128xf32>
    %23 = vector.shape_cast %19 : vector<8x128xf32> to vector<1x8x128xf32>
    tpu.vector_store %arg7[%20, %c0_18, %c0_19], %23 {strides = array<i32>} : memref<8x8x128xf32, #tpu.memory_space<vmem>>, vector<1x8x128xf32>,
    %c1_i32 = arith.constant 1 : i32
    %24 = arith.index_cast %c1_i32 : i32 to index
    %c0_20 = arith.constant 0 : index
    %c0_21 = arith.constant 0 : index
    %25 = vector.load %arg7[%24, %c0_20, %c0_21] : memref<8x8x128xf32, #tpu.memory_space<vmem>>, vector<1x8x128xf32>
    %26 = vector.shape_cast %25 : vector<1x8x128xf32> to vector<8x128xf32>
    %cst_22 = arith.constant dense<0.000000e+00> : vector<8x128xf32>
    %27 = tpu.matmul %19, %12, %cst_22 {dimension_numbers = #tpu.dot_dimension_numbers<[1], [0], [0], [1], [0, 0, 1, 1], [], []>} : vector<8x128xf32>, vector<128x128xf32>, vector<8x128xf32> -> vector<8x128xf32>
    %28 = arith.addf %26, %27 : vector<8x128xf32>
    %29 = math.tanh %28 : vector<8x128xf32>
    %30 = arith.index_cast %c1_i32 : i32 to index
    %c0_23 = arith.constant 0 : index
    %c0_24 = arith.constant 0 : index
    %31 = vector.load %arg7[%30, %c0_23, %c0_24] : memref<8x8x128xf32, #tpu.memory_space<vmem>>, vector<1x8x128xf32>
    %32 = vector.shape_cast %31 : vector<1x8x128xf32> to vector<8x128xf32>
    %33 = vector.shape_cast %29 : vector<8x128xf32> to vector<1x8x128xf32>
    tpu.vector_store %arg7[%30, %c0_23, %c0_24], %33 {strides = array<i32>} : memref<8x8x128xf32, #tpu.memory_space<vmem>>, vector<1x8x128xf32>,
    %c2_i32 = arith.constant 2 : i32
    %34 = arith.index_cast %c2_i32 : i32 to index
    %c0_25 = arith.constant 0 : index
    %c0_26 = arith.constant 0 : index
    %35 = vector.load %arg7[%34, %c0_25, %c0_26] : memref<8x8x128xf32, #tpu.memory_space<vmem>>, vector<1x8x128xf32>
    %36 = vector.shape_cast %35 : vector<1x8x128xf32> to vector<8x128xf32>
    %cst_27 = arith.constant dense<0.000000e+00> : vector<8x128xf32>
    %37 = tpu.matmul %29, %12, %cst_27 {dimension_numbers = #tpu.dot_dimension_numbers<[1], [0], [0], [1], [0, 0, 1, 1], [], []>} : vector<8x128xf32>, vector<128x128xf32>, vector<8x128xf32> -> vector<8x128xf32>
    %38 = arith.addf %36, %37 : vector<8x128xf32>
    %39 = math.tanh %38 : vector<8x128xf32>
    %40 = arith.index_cast %c2_i32 : i32 to index
    %c0_28 = arith.constant 0 : index
    %c0_29 = arith.constant 0 : index
    %41 = vector.load %arg7[%40, %c0_28, %c0_29] : memref<8x8x128xf32, #tpu.memory_space<vmem>>, vector<1x8x128xf32>
    %42 = vector.shape_cast %41 : vector<1x8x128xf32> to vector<8x128xf32>
    %43 = vector.shape_cast %39 : vector<8x128xf32> to vector<1x8x128xf32>
    tpu.vector_store %arg7[%40, %c0_28, %c0_29], %43 {strides = array<i32>} : memref<8x8x128xf32, #tpu.memory_space<vmem>>, vector<1x8x128xf32>,
    %c3_i32 = arith.constant 3 : i32
    %44 = arith.index_cast %c3_i32 : i32 to index
    %c0_30 = arith.constant 0 : index
    %c0_31 = arith.constant 0 : index
    %45 = vector.load %arg7[%44, %c0_30, %c0_31] : memref<8x8x128xf32, #tpu.memory_space<vmem>>, vector<1x8x128xf32>
    %46 = vector.shape_cast %45 : vector<1x8x128xf32> to vector<8x128xf32>
    %cst_32 = arith.constant dense<0.000000e+00> : vector<8x128xf32>
    %47 = tpu.matmul %39, %12, %cst_32 {dimension_numbers = #tpu.dot_dimension_numbers<[1], [0], [0], [1], [0, 0, 1, 1], [], []>} : vector<8x128xf32>, vector<128x128xf32>, vector<8x128xf32> -> vector<8x128xf32>
    %48 = arith.addf %46, %47 : vector<8x128xf32>
    %49 = math.tanh %48 : vector<8x128xf32>
    %50 = arith.index_cast %c3_i32 : i32 to index
    %c0_33 = arith.constant 0 : index
    %c0_34 = arith.constant 0 : index
    %51 = vector.load %arg7[%50, %c0_33, %c0_34] : memref<8x8x128xf32, #tpu.memory_space<vmem>>, vector<1x8x128xf32>
    %52 = vector.shape_cast %51 : vector<1x8x128xf32> to vector<8x128xf32>
    %53 = vector.shape_cast %49 : vector<8x128xf32> to vector<1x8x128xf32>
    tpu.vector_store %arg7[%50, %c0_33, %c0_34], %53 {strides = array<i32>} : memref<8x8x128xf32, #tpu.memory_space<vmem>>, vector<1x8x128xf32>,
    %c4_i32 = arith.constant 4 : i32
    %54 = arith.index_cast %c4_i32 : i32 to index
    %c0_35 = arith.constant 0 : index
    %c0_36 = arith.constant 0 : index
    %55 = vector.load %arg7[%54, %c0_35, %c0_36] : memref<8x8x128xf32, #tpu.memory_space<vmem>>, vector<1x8x128xf32>
    %56 = vector.shape_cast %55 : vector<1x8x128xf32> to vector<8x128xf32>
    %cst_37 = arith.constant dense<0.000000e+00> : vector<8x128xf32>
    %57 = tpu.matmul %49, %12, %cst_37 {dimension_numbers = #tpu.dot_dimension_numbers<[1], [0], [0], [1], [0, 0, 1, 1], [], []>} : vector<8x128xf32>, vector<128x128xf32>, vector<8x128xf32> -> vector<8x128xf32>
    %58 = arith.addf %56, %57 : vector<8x128xf32>
    %59 = math.tanh %58 : vector<8x128xf32>
    %60 = arith.index_cast %c4_i32 : i32 to index
    %c0_38 = arith.constant 0 : index
    %c0_39 = arith.constant 0 : index
    %61 = vector.load %arg7[%60, %c0_38, %c0_39] : memref<8x8x128xf32, #tpu.memory_space<vmem>>, vector<1x8x128xf32>
    %62 = vector.shape_cast %61 : vector<1x8x128xf32> to vector<8x128xf32>
    %63 = vector.shape_cast %59 : vector<8x128xf32> to vector<1x8x128xf32>
    tpu.vector_store %arg7[%60, %c0_38, %c0_39], %63 {strides = array<i32>} : memref<8x8x128xf32, #tpu.memory_space<vmem>>, vector<1x8x128xf32>,
    %c5_i32 = arith.constant 5 : i32
    %64 = arith.index_cast %c5_i32 : i32 to index
    %c0_40 = arith.constant 0 : index
    %c0_41 = arith.constant 0 : index
    %65 = vector.load %arg7[%64, %c0_40, %c0_41] : memref<8x8x128xf32, #tpu.memory_space<vmem>>, vector<1x8x128xf32>
    %66 = vector.shape_cast %65 : vector<1x8x128xf32> to vector<8x128xf32>
    %cst_42 = arith.constant dense<0.000000e+00> : vector<8x128xf32>
    %67 = tpu.matmul %59, %12, %cst_42 {dimension_numbers = #tpu.dot_dimension_numbers<[1], [0], [0], [1], [0, 0, 1, 1], [], []>} : vector<8x128xf32>, vector<128x128xf32>, vector<8x128xf32> -> vector<8x128xf32>
    %68 = arith.addf %66, %67 : vector<8x128xf32>
    %69 = math.tanh %68 : vector<8x128xf32>
    %70 = arith.index_cast %c5_i32 : i32 to index
    %c0_43 = arith.constant 0 : index
    %c0_44 = arith.constant 0 : index
    %71 = vector.load %arg7[%70, %c0_43, %c0_44] : memref<8x8x128xf32, #tpu.memory_space<vmem>>, vector<1x8x128xf32>
    %72 = vector.shape_cast %71 : vector<1x8x128xf32> to vector<8x128xf32>
    %73 = vector.shape_cast %69 : vector<8x128xf32> to vector<1x8x128xf32>
    tpu.vector_store %arg7[%70, %c0_43, %c0_44], %73 {strides = array<i32>} : memref<8x8x128xf32, #tpu.memory_space<vmem>>, vector<1x8x128xf32>,
    %c6_i32 = arith.constant 6 : i32
    %74 = arith.index_cast %c6_i32 : i32 to index
    %c0_45 = arith.constant 0 : index
    %c0_46 = arith.constant 0 : index
    %75 = vector.load %arg7[%74, %c0_45, %c0_46] : memref<8x8x128xf32, #tpu.memory_space<vmem>>, vector<1x8x128xf32>
    %76 = vector.shape_cast %75 : vector<1x8x128xf32> to vector<8x128xf32>
    %cst_47 = arith.constant dense<0.000000e+00> : vector<8x128xf32>
    %77 = tpu.matmul %69, %12, %cst_47 {dimension_numbers = #tpu.dot_dimension_numbers<[1], [0], [0], [1], [0, 0, 1, 1], [], []>} : vector<8x128xf32>, vector<128x128xf32>, vector<8x128xf32> -> vector<8x128xf32>
    %78 = arith.addf %76, %77 : vector<8x128xf32>
    %79 = math.tanh %78 : vector<8x128xf32>
    %80 = arith.index_cast %c6_i32 : i32 to index
    %c0_48 = arith.constant 0 : index
    %c0_49 = arith.constant 0 : index
    %81 = vector.load %arg7[%80, %c0_48, %c0_49] : memref<8x8x128xf32, #tpu.memory_space<vmem>>, vector<1x8x128xf32>
    %82 = vector.shape_cast %81 : vector<1x8x128xf32> to vector<8x128xf32>
    %83 = vector.shape_cast %79 : vector<8x128xf32> to vector<1x8x128xf32>
    tpu.vector_store %arg7[%80, %c0_48, %c0_49], %83 {strides = array<i32>} : memref<8x8x128xf32, #tpu.memory_space<vmem>>, vector<1x8x128xf32>,
    %c7_i32 = arith.constant 7 : i32
    %84 = arith.index_cast %c7_i32 : i32 to index
    %c0_50 = arith.constant 0 : index
    %c0_51 = arith.constant 0 : index
    %85 = vector.load %arg7[%84, %c0_50, %c0_51] : memref<8x8x128xf32, #tpu.memory_space<vmem>>, vector<1x8x128xf32>
    %86 = vector.shape_cast %85 : vector<1x8x128xf32> to vector<8x128xf32>
    %cst_52 = arith.constant dense<0.000000e+00> : vector<8x128xf32>
    %87 = tpu.matmul %79, %12, %cst_52 {dimension_numbers = #tpu.dot_dimension_numbers<[1], [0], [0], [1], [0, 0, 1, 1], [], []>} : vector<8x128xf32>, vector<128x128xf32>, vector<8x128xf32> -> vector<8x128xf32>
    %88 = arith.addf %86, %87 : vector<8x128xf32>
    %89 = math.tanh %88 : vector<8x128xf32>
    %90 = arith.index_cast %c7_i32 : i32 to index
    %c0_53 = arith.constant 0 : index
    %c0_54 = arith.constant 0 : index
    %91 = vector.load %arg7[%90, %c0_53, %c0_54] : memref<8x8x128xf32, #tpu.memory_space<vmem>>, vector<1x8x128xf32>
    %92 = vector.shape_cast %91 : vector<1x8x128xf32> to vector<8x128xf32>
    %93 = vector.shape_cast %89 : vector<8x128xf32> to vector<1x8x128xf32>
    tpu.vector_store %arg7[%90, %c0_53, %c0_54], %93 {strides = array<i32>} : memref<8x8x128xf32, #tpu.memory_space<vmem>>, vector<1x8x128xf32>,
    %c8_i32 = arith.constant 8 : i32
    %c0_55 = arith.constant 0 : index
    %c0_56 = arith.constant 0 : index
    %94 = vector.load %arg8[%c0_55, %c0_56] : memref<8x128xf32, #tpu.memory_space<vmem>>, vector<8x128xf32>
    tpu.vector_store %arg8[%c0_55, %c0_56], %89 {strides = array<i32>} : memref<8x128xf32, #tpu.memory_space<vmem>>, vector<8x128xf32>,
    return
  }
  func.func @transform_0(%arg0: i32, %arg1: i32) -> (i32, i32, i32) {
    %c0_i32 = arith.constant 0 : i32
    %c0_i32_0 = arith.constant 0 : i32
    return %arg1, %arg0, %c0_i32 : i32, i32, i32
  }
  func.func @transform_1(%arg0: i32, %arg1: i32) -> (i32, i32) {
    %c0_i32 = arith.constant 0 : i32
    %c0_i32_0 = arith.constant 0 : i32
    return %arg0, %c0_i32 : i32, i32
  }
  func.func @transform_2(%arg0: i32, %arg1: i32) -> (i32, i32) {
    %c0_i32 = arith.constant 0 : i32
    %c0_i32_0 = arith.constant 0 : i32
    %c0_i32_1 = arith.constant 0 : i32
    return %c0_i32, %c0_i32_0 : i32, i32
  }
  func.func @transform_3(%arg0: i32, %arg1: i32) -> (i32, i32) {
    %c0_i32 = arith.constant 0 : i32
    %c0_i32_0 = arith.constant 0 : i32
    %c0_i32_1 = arith.constant 0 : i32
    return %c0_i32, %c0_i32_0 : i32, i32
  }
  func.func @transform_4(%arg0: i32, %arg1: i32) -> (i32, i32) {
    %c0_i32 = arith.constant 0 : i32
    %c0_i32_0 = arith.constant 0 : i32
    %c0_i32_1 = arith.constant 0 : i32
    return %c0_i32, %c0_i32_0 : i32, i32
  }
  func.func @transform_5(%arg0: i32, %arg1: i32) -> (i32, i32, i32) {
    %c0_i32 = arith.constant 0 : i32
    %c0_i32_0 = arith.constant 0 : i32
    return %arg1, %arg0, %c0_i32 : i32, i32, i32
  }
}

</mosaic_0001>

<llo_original>
// kernel: rnn_forward.1
$region0: #{rnn_forward.1}
  #allocation0 [shape = 'u32[]', space=smem, size = 0x4, offset = 0x4, fixed_abs, tag = 'smem constant byte address 0x4 - core index']
  #allocation1 [shape = 'u32[72,128]{1,0:T(1,128)}', space=vmem, size = 0x9000, scoped, tag = 'internal scratch']
  #allocation2 [shape = 'f32[8,128]{1,0:T(8,128)}', space=vmem, size = 0x1000, scoped, tag = 'scratch operand']
  %s0 = inlined_call_operand.vmem [shape: f32[8,8,1], index: 0, kind: input, shape index: {}]
  %s1 = inlined_call_operand.vmem [shape: f32[8,128], index: 1, kind: input, shape index: {}]
  %s2 = inlined_call_operand.vmem [shape: f32[1,128], index: 2, kind: input, shape index: {}]
  %s3 = inlined_call_operand.vmem [shape: f32[128,128], index: 3, kind: input, shape index: {}]
  %s4 = inlined_call_operand.vmem [shape: f32[1,128], index: 4, kind: input, shape index: {}]
  %s5 = inlined_call_operand.vmem [shape: f32[8,8,128], index: 5, kind: output, shape index: {}]
  %s6 = sld [smem:[#allocation0]]
  $region34: #{rnn_forward.1} parent=0
    _
  %s8 = ssub.s32 1, %s6
  %s9 = scalar_select 0, %s8, %s6
  // Predicated region
  $region2: #{rnn_forward.1} parent=0 // pred_check
    _
  $region3: #{rnn_forward.1} parent=0 // pred_check_branch
    %11 = sbr.rel (0) target = $region5
  $region4: #{rnn_forward.1} parent=0 // pred_region
    _
  $region5: #{rnn_forward.1} parent=0 // pred_fallthru
    _
  // Predicated region
  $region6: #{rnn_forward.1} parent=0 // pred_check
    _
  $region7: #{rnn_forward.1} parent=0 // pred_check_branch
    %13 = sbr.rel (0) target = $region9
  $region8: #{rnn_forward.1} parent=0 // pred_region
    _
  $region9: #{rnn_forward.1} parent=0 // pred_fallthru
    _
  // Predicated region
  $region10: #{rnn_forward.1} parent=0 // pred_check
    _
  $region11: #{rnn_forward.1} parent=0 // pred_check_branch
    %15 = sbr.rel (0) target = $region13
  $region12: #{rnn_forward.1} parent=0 // pred_region
    _
  $region13: #{rnn_forward.1} parent=0 // pred_fallthru
    _
  // Predicated region
  $region14: #{rnn_forward.1} parent=0 // pred_check
    _
  $region15: #{rnn_forward.1} parent=0 // pred_check_branch
    %17 = sbr.rel (0) target = $region17
  $region16: #{rnn_forward.1} parent=0 // pred_region
    _
  $region17: #{rnn_forward.1} parent=0 // pred_fallthru
    _
  // Predicated region
  $region18: #{rnn_forward.1} parent=0 // pred_check
    _
  $region19: #{rnn_forward.1} parent=0 // pred_check_branch
    %19 = sbr.rel (0) target = $region21
  $region20: #{rnn_forward.1} parent=0 // pred_region
    _
  $region21: #{rnn_forward.1} parent=0 // pred_fallthru
    _
  %p20 = scmp.eq.s32.totalorder 0, 0
  // Predicated region
  $region22: #{rnn_forward.1} parent=0 // pred_check
    %p21 = pneg %p20
  $region23: #{rnn_forward.1} parent=0 // pred_check_branch
    %23 = sbr.rel (%p21) target = $region25
  $region24: #{rnn_forward.1} parent=0 // pred_region
    %v24 = vld [vmem:[%s1] sm:$0xff]
    %25 = vst [vmem:[#allocation2] sm:$0xff] %v24
  $region25: #{rnn_forward.1} parent=0 // pred_fallthru
    _
  %v26 = vld [vmem:[%s0] sm:$0xff]
  %v27 = vld [vmem:[%s0 + $0x8] sm:$0xff]
  %v28 = vld [vmem:[%s0 + $0x10] sm:$0xff]
  %v29 = vld [vmem:[%s0 + $0x18] sm:$0xff]
  %v30 = vld [vmem:[%s0 + $0x20] sm:$0xff]
  %v31 = vld [vmem:[%s0 + $0x28] sm:$0xff]
  %v32 = vld [vmem:[%s0 + $0x30] sm:$0xff]
  %v33 = vld [vmem:[%s0 + $0x38] sm:$0xff]
  %v34 = vld [vmem:[%s2] sm:$0x1]
  %v35 = vld [vmem:[%s4] sm:$0x1]
  %v37 = vperm.slane %v35, 0
  %vm39 = vcmask 7168
  %v41 = vsel %vm39, %v26, 0
  %v44 = vsel %vm39, %v27, 0
  %v47 = vsel %vm39, %v28, 0
  %v50 = vsel %vm39, %v29, 0
  %v53 = vsel %vm39, %v30, 0
  %v56 = vsel %vm39, %v31, 0
  %v59 = vsel %vm39, %v32, 0
  %v62 = vsel %vm39, %v33, 0
  %vm64 = vcmask 1040384
  %v66 = vsel %vm64, %v34, 0
  %68 = vmatpush.msra.mxu0 0.0
  %69 = vmatpush.msra.mxu0 0.0
  %70 = vmatpush.msra.mxu0 0.0
  %71 = vmatpush.msra.mxu0 0.0
  %72 = vmatpush.msra.mxu0 0.0
  %73 = vmatpush.msra.mxu0 0.0
  %74 = vmatpush.msra.mxu0 0.0
  %75 = vmatpush.msra.mxu0 0.0
  %76 = vmatpush.msra.mxu0 0.0
  %77 = vmatpush.msra.mxu0 0.0
  %78 = vmatpush.msra.mxu0 0.0
  %79 = vmatpush.msra.mxu0 0.0
  %80 = vmatpush.msra.mxu0 0.0
  %81 = vmatpush.msra.mxu0 0.0
  %82 = vmatpush.msra.mxu0 0.0
  %83 = vmatpush.msra.mxu0 %v66
  %84 = vmatmul.f32.gmra.mxu0 %v41
  %v85 = vpop.f32.mrf.mxu0
  %v86 = vadd.f32 %v37, %v85
  %87 = vmatmul.f32.gmra.mxu0 %v44
  %v88 = vpop.f32.mrf.mxu0
  %v89 = vadd.f32 %v37, %v88
  %90 = vmatmul.f32.gmra.mxu0 %v47
  %v91 = vpop.f32.mrf.mxu0
  %v92 = vadd.f32 %v37, %v91
  %93 = vmatmul.f32.gmra.mxu0 %v50
  %v94 = vpop.f32.mrf.mxu0
  %v95 = vadd.f32 %v37, %v94
  %96 = vmatmul.f32.gmra.mxu0 %v53
  %v97 = vpop.f32.mrf.mxu0
  %v98 = vadd.f32 %v37, %v97
  %99 = vmatmul.f32.gmra.mxu0 %v56
  %v100 = vpop.f32.mrf.mxu0
  %v101 = vadd.f32 %v37, %v100
  %102 = vmatmul.f32.gmra.mxu0 %v59
  %v103 = vpop.f32.mrf.mxu0
  %v104 = vadd.f32 %v37, %v103
  %105 = vmatmul.f32.gmra.mxu0 %v62
  %v106 = vpop.f32.mrf.mxu0
  %v107 = vadd.f32 %v37, %v106
  %108 = vdwg.mxu0
  %109 = vst [vmem:[%s5] sm:$0xff] %v86
  %110 = vst [vmem:[%s5 + $0x8] sm:$0xff] %v89
  %111 = vst [vmem:[%s5 + $0x10] sm:$0xff] %v92
  %112 = vst [vmem:[%s5 + $0x18] sm:$0xff] %v95
  %113 = vst [vmem:[%s5 + $0x20] sm:$0xff] %v98
  %114 = vst [vmem:[%s5 + $0x28] sm:$0xff] %v101
  %115 = vst [vmem:[%s5 + $0x30] sm:$0xff] %v104
  %116 = vst [vmem:[%s5 + $0x38] sm:$0xff] %v107
  %v117 = vld [vmem:[%s3] sm:$0xff]
  %v118 = vld [vmem:[%s3 + $0x8] sm:$0xff]
  %v119 = vld [vmem:[%s3 + $0x10] sm:$0xff]
  %v120 = vld [vmem:[%s3 + $0x18] sm:$0xff]
  %v121 = vld [vmem:[%s3 + $0x20] sm:$0xff]
  %v122 = vld [vmem:[%s3 + $0x28] sm:$0xff]
  %v123 = vld [vmem:[%s3 + $0x30] sm:$0xff]
  %v124 = vld [vmem:[%s3 + $0x38] sm:$0xff]
  %v125 = vld [vmem:[%s3 + $0x40] sm:$0xff]
  %v126 = vld [vmem:[%s3 + $0x48] sm:$0xff]
  %v127 = vld [vmem:[%s3 + $0x50] sm:$0xff]
  %v128 = vld [vmem:[%s3 + $0x58] sm:$0xff]
  %v129 = vld [vmem:[%s3 + $0x60] sm:$0xff]
  %v130 = vld [vmem:[%s3 + $0x68] sm:$0xff]
  %v131 = vld [vmem:[%s3 + $0x70] sm:$0xff]
  %v132 = vld [vmem:[%s3 + $0x78] sm:$0xff]
  %v133 = vld [vmem:[#allocation2] sm:$0xff]
  %v134 = vld [vmem:[%s5] sm:$0xff]
  %135 = vmatpush.msra.mxu0 %v132
  %136 = vmatpush.msra.mxu0 %v131
  %137 = vmatpush.msra.mxu0 %v130
  %138 = vmatpush.msra.mxu0 %v129
  %139 = vmatpush.msra.mxu0 %v128
  %140 = vmatpush.msra.mxu0 %v127
  %141 = vmatpush.msra.mxu0 %v126
  %142 = vmatpush.msra.mxu0 %v125
  %143 = vmatpush.msra.mxu0 %v124
  %144 = vmatpush.msra.mxu0 %v123
  %145 = vmatpush.msra.mxu0 %v122
  %146 = vmatpush.msra.mxu0 %v121
  %147 = vmatpush.msra.mxu0 %v120
  %148 = vmatpush.msra.mxu0 %v119
  %149 = vmatpush.msra.mxu0 %v118
  %150 = vmatpush.msra.mxu0 %v117
  %151 = vmatmul.f32.gmra.mxu0 %v133
  %v152 = vpop.f32.mrf.mxu0
  %v153 = vadd.f32 0.0, %v152
  %154 = vdwg.mxu0
  %v155 = vadd.f32 %v134, %v153
  %v156 = vtanh.pop %v155
  %157 = vst [vmem:[%s5] sm:$0xff] %v156
  %s158 = scalar_lea.vmem %s5, 8
  %v159 = vld [vmem:[%s158] sm:$0xff]
  %160 = vmatpush.msra.mxu0 %v132
  %161 = vmatpush.msra.mxu0 %v131
  %162 = vmatpush.msra.mxu0 %v130
  %163 = vmatpush.msra.mxu0 %v129
  %164 = vmatpush.msra.mxu0 %v128
  %165 = vmatpush.msra.mxu0 %v127
  %166 = vmatpush.msra.mxu0 %v126
  %167 = vmatpush.msra.mxu0 %v125
  %168 = vmatpush.msra.mxu0 %v124
  %169 = vmatpush.msra.mxu0 %v123
  %170 = vmatpush.msra.mxu0 %v122
  %171 = vmatpush.msra.mxu0 %v121
  %172 = vmatpush.msra.mxu0 %v120
  %173 = vmatpush.msra.mxu0 %v119
  %174 = vmatpush.msra.mxu0 %v118
  %175 = vmatpush.msra.mxu0 %v117
  %176 = vmatmul.f32.gmra.mxu0 %v156
  %v177 = vpop.f32.mrf.mxu0
  %v178 = vadd.f32 0.0, %v177
  %179 = vdwg.mxu0
  %v180 = vadd.f32 %v159, %v178
  %v181 = vtanh.pop %v180
  %182 = vst [vmem:[%s158] sm:$0xff] %v181
  %s183 = scalar_lea.vmem %s5, 16
  %v184 = vld [vmem:[%s183] sm:$0xff]
  %185 = vmatpush.msra.mxu0 %v132
  %186 = vmatpush.msra.mxu0 %v131
  %187 = vmatpush.msra.mxu0 %v130
  %188 = vmatpush.msra.mxu0 %v129
  %189 = vmatpush.msra.mxu0 %v128
  %190 = vmatpush.msra.mxu0 %v127
  %191 = vmatpush.msra.mxu0 %v126
  %192 = vmatpush.msra.mxu0 %v125
  %193 = vmatpush.msra.mxu0 %v124
  %194 = vmatpush.msra.mxu0 %v123
  %195 = vmatpush.msra.mxu0 %v122
  %196 = vmatpush.msra.mxu0 %v121
  %197 = vmatpush.msra.mxu0 %v120
  %198 = vmatpush.msra.mxu0 %v119
  %199 = vmatpush.msra.mxu0 %v118
  %200 = vmatpush.msra.mxu0 %v117
  %201 = vmatmul.f32.gmra.mxu0 %v181
  %v202 = vpop.f32.mrf.mxu0
  %v203 = vadd.f32 0.0, %v202
  %204 = vdwg.mxu0
  %v205 = vadd.f32 %v184, %v203
  %v206 = vtanh.pop %v205
  %207 = vst [vmem:[%s183] sm:$0xff] %v206
  %s208 = scalar_lea.vmem %s5, 24
  %v209 = vld [vmem:[%s208] sm:$0xff]
  %210 = vmatpush.msra.mxu0 %v132
  %211 = vmatpush.msra.mxu0 %v131
  %212 = vmatpush.msra.mxu0 %v130
  %213 = vmatpush.msra.mxu0 %v129
  %214 = vmatpush.msra.mxu0 %v128
  %215 = vmatpush.msra.mxu0 %v127
  %216 = vmatpush.msra.mxu0 %v126
  %217 = vmatpush.msra.mxu0 %v125
  %218 = vmatpush.msra.mxu0 %v124
  %219 = vmatpush.msra.mxu0 %v123
  %220 = vmatpush.msra.mxu0 %v122
  %221 = vmatpush.msra.mxu0 %v121
  %222 = vmatpush.msra.mxu0 %v120
  %223 = vmatpush.msra.mxu0 %v119
  %224 = vmatpush.msra.mxu0 %v118
  %225 = vmatpush.msra.mxu0 %v117
  %226 = vmatmul.f32.gmra.mxu0 %v206
  %v227 = vpop.f32.mrf.mxu0
  %v228 = vadd.f32 0.0, %v227
  %229 = vdwg.mxu0
  %v230 = vadd.f32 %v209, %v228
  %v231 = vtanh.pop %v230
  %232 = vst [vmem:[%s208] sm:$0xff] %v231
  %s233 = scalar_lea.vmem %s5, 32
  %v234 = vld [vmem:[%s233] sm:$0xff]
  %235 = vmatpush.msra.mxu0 %v132
  %236 = vmatpush.msra.mxu0 %v131
  %237 = vmatpush.msra.mxu0 %v130
  %238 = vmatpush.msra.mxu0 %v129
  %239 = vmatpush.msra.mxu0 %v128
  %240 = vmatpush.msra.mxu0 %v127
  %241 = vmatpush.msra.mxu0 %v126
  %242 = vmatpush.msra.mxu0 %v125
  %243 = vmatpush.msra.mxu0 %v124
  %244 = vmatpush.msra.mxu0 %v123
  %245 = vmatpush.msra.mxu0 %v122
  %246 = vmatpush.msra.mxu0 %v121
  %247 = vmatpush.msra.mxu0 %v120
  %248 = vmatpush.msra.mxu0 %v119
  %249 = vmatpush.msra.mxu0 %v118
  %250 = vmatpush.msra.mxu0 %v117
  %251 = vmatmul.f32.gmra.mxu0 %v231
  %v252 = vpop.f32.mrf.mxu0
  %v253 = vadd.f32 0.0, %v252
  %254 = vdwg.mxu0
  %v255 = vadd.f32 %v234, %v253
  %v256 = vtanh.pop %v255
  %257 = vst [vmem:[%s233] sm:$0xff] %v256
  %s258 = scalar_lea.vmem %s5, 40
  %v259 = vld [vmem:[%s258] sm:$0xff]
  %260 = vmatpush.msra.mxu0 %v132
  %261 = vmatpush.msra.mxu0 %v131
  %262 = vmatpush.msra.mxu0 %v130
  %263 = vmatpush.msra.mxu0 %v129
  %264 = vmatpush.msra.mxu0 %v128
  %265 = vmatpush.msra.mxu0 %v127
  %266 = vmatpush.msra.mxu0 %v126
  %267 = vmatpush.msra.mxu0 %v125
  %268 = vmatpush.msra.mxu0 %v124
  %269 = vmatpush.msra.mxu0 %v123
  %270 = vmatpush.msra.mxu0 %v122
  %271 = vmatpush.msra.mxu0 %v121
  %272 = vmatpush.msra.mxu0 %v120
  %273 = vmatpush.msra.mxu0 %v119
  %274 = vmatpush.msra.mxu0 %v118
  %275 = vmatpush.msra.mxu0 %v117
  %276 = vmatmul.f32.gmra.mxu0 %v256
  %v277 = vpop.f32.mrf.mxu0
  %v278 = vadd.f32 0.0, %v277
  %279 = vdwg.mxu0
  %v280 = vadd.f32 %v259, %v278
  %v281 = vtanh.pop %v280
  %282 = vst [vmem:[%s258] sm:$0xff] %v281
  %s283 = scalar_lea.vmem %s5, 48
  %v284 = vld [vmem:[%s283] sm:$0xff]
  %285 = vmatpush.msra.mxu0 %v132
  %286 = vmatpush.msra.mxu0 %v131
  %287 = vmatpush.msra.mxu0 %v130
  %288 = vmatpush.msra.mxu0 %v129
  %289 = vmatpush.msra.mxu0 %v128
  %290 = vmatpush.msra.mxu0 %v127
  %291 = vmatpush.msra.mxu0 %v126
  %292 = vmatpush.msra.mxu0 %v125
  %293 = vmatpush.msra.mxu0 %v124
  %294 = vmatpush.msra.mxu0 %v123
  %295 = vmatpush.msra.mxu0 %v122
  %296 = vmatpush.msra.mxu0 %v121
  %297 = vmatpush.msra.mxu0 %v120
  %298 = vmatpush.msra.mxu0 %v119
  %299 = vmatpush.msra.mxu0 %v118
  %300 = vmatpush.msra.mxu0 %v117
  %301 = vmatmul.f32.gmra.mxu0 %v281
  %v302 = vpop.f32.mrf.mxu0
  %v303 = vadd.f32 0.0, %v302
  %304 = vdwg.mxu0
  %v305 = vadd.f32 %v284, %v303
  %v306 = vtanh.pop %v305
  %307 = vst [vmem:[%s283] sm:$0xff] %v306
  %s308 = scalar_lea.vmem %s5, 56
  %v309 = vld [vmem:[%s308] sm:$0xff]
  %310 = vmatpush.msra.mxu0 %v132
  %311 = vmatpush.msra.mxu0 %v131
  %312 = vmatpush.msra.mxu0 %v130
  %313 = vmatpush.msra.mxu0 %v129
  %314 = vmatpush.msra.mxu0 %v128
  %315 = vmatpush.msra.mxu0 %v127
  %316 = vmatpush.msra.mxu0 %v126
  %317 = vmatpush.msra.mxu0 %v125
  %318 = vmatpush.msra.mxu0 %v124
  %319 = vmatpush.msra.mxu0 %v123
  %320 = vmatpush.msra.mxu0 %v122
  %321 = vmatpush.msra.mxu0 %v121
  %322 = vmatpush.msra.mxu0 %v120
  %323 = vmatpush.msra.mxu0 %v119
  %324 = vmatpush.msra.mxu0 %v118
  %325 = vmatpush.msra.mxu0 %v117
  %326 = vmatmul.f32.gmra.mxu0 %v306
  %v327 = vpop.f32.mrf.mxu0
  %v328 = vadd.f32 0.0, %v327
  %329 = vdwg.mxu0
  %v330 = vadd.f32 %v309, %v328
  %v331 = vtanh.pop %v330
  %332 = vst [vmem:[%s308] sm:$0xff] %v331
  %333 = vst [vmem:[#allocation2] sm:$0xff] %v331
  // Predicated region
  $region26: #{rnn_forward.1} parent=0 // pred_check
    _
  $region27: #{rnn_forward.1} parent=0 // pred_check_branch
    %335 = sbr.rel (0) target = $region29
  $region28: #{rnn_forward.1} parent=0 // pred_region
    _
  $region29: #{rnn_forward.1} parent=0 // pred_fallthru
    _
  // Predicated region
  $region30: #{rnn_forward.1} parent=0 // pred_check
    _
  $region31: #{rnn_forward.1} parent=0 // pred_check_branch
    %337 = sbr.rel (0) target = $region33
  $region32: #{rnn_forward.1} parent=0 // pred_region
    _
  $region33: #{rnn_forward.1} parent=0 // pred_fallthru
    _

</llo_original>
